<compile_context>
chip_gen: v5e
topology: v5e:2x2
jax: 0.10.0
libtpu: 0.0.40
codegen_flags: <defaults>
</compile_context>

<pallas_src>
import functools

import jax
import jax.numpy as jnp
from jax.experimental import pallas as pl
from jax.experimental.pallas import tpu as pltpu

BN_EPS = 1e-5


def _choose_tile_n(n):
    """Lane-dense N tile: largest multiple-of-128 tile up to 2048, else full N.

    Tiles are small (out_C is narrow), so even 2048 stays far under scoped VMEM
    on every generation (v5e/v6e/v7x); edge blocks are masked in the stats pass.
    """
    for t in (2048, 1024, 512, 256, 128):
        if n >= t:
            return t
    return n


def _stats_kernel(xa_ref, wa_ref, yb_ref, gamma_ref, beta_ref,
                  scale_ref, shift_ref,
                  *, n_total, tile_n, inv_count, needs_mask):
    """Pass 1: accumulate per-channel sum / sumsq, finalize folded scale/shift.

    xa_ref:    (1, A_C, TN)   channel-first activation tile
    wa_ref:    (out_C, A_C)   conv1x1 weight (resident constant)
    yb_ref:    (1, out_C, 1)  per-batch set-level projection (resident per b)
    gamma_ref: (out_C, 1)     BN scale
    beta_ref:  (out_C, 1)     BN shift
    scale_ref: (out_C, 1)     output; doubles as the running-sum accumulator,
                              finalized to gamma * rsqrt(var + eps)
    shift_ref: (out_C, 1)     output; doubles as the running-sumsq accumulator,
                              finalized to beta - mean * scale
    """
    b = pl.program_id(0)
    nt = pl.program_id(1)

    @pl.when((b == 0) & (nt == 0))
    def _init():
        scale_ref[...] = jnp.zeros_like(scale_ref)   # running sum
        shift_ref[...] = jnp.zeros_like(shift_ref)   # running sum of squares

    # 1x1 conv == single 2-D matmul per tile (MXU): (out_C, A_C) @ (A_C, TN).
    x = jnp.dot(wa_ref[...], xa_ref[0], preferred_element_type=jnp.float32)
    x = x + yb_ref[0]                                # broadcast (out_C,1) over N lanes

    if needs_mask:                                   # compile-time branch: edge tiles only
        lane = jax.lax.broadcasted_iota(jnp.int32, x.shape, 1)
        valid = (nt * tile_n + lane) < n_total
        x = jnp.where(valid, x, 0.0)

    scale_ref[...] += jnp.sum(x, axis=1, keepdims=True)
    shift_ref[...] += jnp.sum(x * x, axis=1, keepdims=True)

    @pl.when((b == pl.num_programs(0) - 1) & (nt == pl.num_programs(1) - 1))
    def _finalize():
        mean = scale_ref[...] * inv_count
        var = shift_ref[...] * inv_count - mean * mean   # biased (training-mode) var
        scale = gamma_ref[...] * jax.lax.rsqrt(var + BN_EPS)
        scale_ref[...] = scale
        shift_ref[...] = beta_ref[...] - mean * scale


def _project_bn_kernel(xa_ref, wa_ref, yb_ref, scale_ref, shift_ref, out_ref):
    """Pass 2: recompute projection (K = A_C tiny) + fused normalize, N-last store."""
    x = jnp.dot(wa_ref[...], xa_ref[0], preferred_element_type=jnp.float32)
    x = x + yb_ref[0]
    out_ref[0] = (x * scale_ref[...] + shift_ref[...]).astype(out_ref.dtype)


def init_params(key, A_C, B_C, out_C, dtype=jnp.float32):
    """Deterministic synthetic parameters matching the PyTorch module's shapes."""
    k1, k2, k3, k4 = jax.random.split(key, 4)
    return {
        # Conv1d(A_C, out_C, 1): weight (out_C, A_C, 1) -> stored squeezed as (out_C, A_C)
        "W_A": jax.random.normal(k1, (out_C, A_C), dtype) * 0.1,
        "b_A": jax.random.normal(k2, (out_C,), dtype) * 0.1,
        # Linear(B_C, out_C): weight (out_C, B_C)
        "W_B": jax.random.normal(k3, (out_C, B_C), dtype) * 0.1,
        "b_B": jax.random.normal(k4, (out_C,), dtype) * 0.1,
        # BatchNorm1d(out_C): affine params at PyTorch defaults
        "gamma": jnp.ones((out_C,), dtype),
        "beta": jnp.zeros((out_C,), dtype),
    }


def concat_project_layer(x_A, x_B, params, *, tile_n=None):
    """x_A: (B, A_C, N), x_B: (B, B_C)  ->  (B, out_C, N)  (float32)."""
    B, A_C, N = x_A.shape
    out_C = params["W_A"].shape[0]
    TN = _choose_tile_n(N) if tile_n is None else tile_n
    num_n = pl.cdiv(N, TN)
    needs_mask = (N % TN) != 0

    xa = x_A.astype(jnp.float32)                                  # (B, A_C, N) — no transpose
    wa = params["W_A"].astype(jnp.float32)                        # (out_C, A_C)
    # Hoisted set-level projection (tiny gemm, once per call).  The per-channel
    # constant biases b_A / b_B cancel exactly under BN's mean subtraction and
    # are therefore dropped — the output is mathematically identical.
    yb = (x_B.astype(jnp.float32) @ params["W_B"].astype(jnp.float32).T)[:, :, None]  # (B, out_C, 1)
    gamma = params["gamma"].astype(jnp.float32).reshape(out_C, 1)
    beta = params["beta"].astype(jnp.float32).reshape(out_C, 1)

    xa_spec = pl.BlockSpec((1, A_C, TN), lambda b, n: (b, 0, n))
    wa_spec = pl.BlockSpec((out_C, A_C), lambda b, n: (0, 0))     # resident constant
    yb_spec = pl.BlockSpec((1, out_C, 1), lambda b, n: (b, 0, 0))
    vec_spec = pl.BlockSpec((out_C, 1), lambda b, n: (0, 0))      # resident constant / accumulator

    # --- Pass 1: per-channel batch statistics -> folded BN scale/shift -------
    scale, shift = pl.pallas_call(
        functools.partial(_stats_kernel, n_total=N, tile_n=TN,
                          inv_count=1.0 / float(B * N), needs_mask=needs_mask),
        grid=(B, num_n),
        in_specs=[xa_spec, wa_spec, yb_spec, vec_spec, vec_spec],
        out_specs=(vec_spec, vec_spec),
        out_shape=(jax.ShapeDtypeStruct((out_C, 1), jnp.float32),
                   jax.ShapeDtypeStruct((out_C, 1), jnp.float32)),
        compiler_params=pltpu.CompilerParams(
            dimension_semantics=("arbitrary", "arbitrary")),
    )(xa, wa, yb, gamma, beta)

    # --- Pass 2: projection + fused normalize, lane-dense channel-first write -
    out = pl.pallas_call(
        _project_bn_kernel,
        grid=(B, num_n),
        in_specs=[xa_spec, wa_spec, yb_spec, vec_spec, vec_spec],
        out_specs=pl.BlockSpec((1, out_C, TN), lambda b, n: (b, 0, n)),
        out_shape=jax.ShapeDtypeStruct((B, out_C, N), jnp.float32),
        compiler_params=pltpu.CompilerParams(
            dimension_semantics=("parallel", "parallel")),   # engages v7x 2nd TC
    )(xa, wa, yb, scale, shift)
    return out


def reference(x_A, x_B, params):
    """Pure-JAX reference mirroring the PyTorch forward (training-mode BN)."""
    ya = jnp.einsum("oc,bcn->bon", params["W_A"], x_A) + params["b_A"][None, :, None]
    yb = x_B @ params["W_B"].T + params["b_B"]
    x = ya + yb[:, :, None]
    mean = jnp.mean(x, axis=(0, 2), keepdims=True)
    var = jnp.mean((x - mean) ** 2, axis=(0, 2), keepdims=True)
    xn = (x - mean) / jnp.sqrt(var + BN_EPS)
    return xn * params["gamma"][None, :, None] + params["beta"][None, :, None]


if __name__ == "__main__":
    B, A_C, B_C, out_C, N = 2, 4, 6, 32, 16

    key = jax.random.PRNGKey(0)
    kx, kb, kp = jax.random.split(key, 3)
    x_A = jax.random.normal(kx, (B, A_C, N), jnp.float32)
    x_B = jax.random.normal(kb, (B, B_C), jnp.float32)
    params = init_params(kp, A_C, B_C, out_C)

    out = concat_project_layer(x_A, x_B, params)
    jax.block_until_ready(out)

    ref = reference(x_A, x_B, params)
    assert out.shape == (B, out_C, N), out.shape
    assert jnp.allclose(out, ref, atol=1e-4, rtol=1e-4), float(jnp.max(jnp.abs(out - ref)))

    print("KERNEL_OK")
</pallas_src>

<mosaic_0001>
module attributes {stable_mosaic.version = 11 : i64} {
  func.func @_stats_kernel(%arg0: i32, %arg1: i32, %arg2: memref<1x4x16xf32, #tpu.memory_space<vmem>>, %arg3: memref<32x4xf32, #tpu.memory_space<vmem>>, %arg4: memref<1x32x1xf32, #tpu.memory_space<vmem>>, %arg5: memref<32x1xf32, #tpu.memory_space<vmem>>, %arg6: memref<32x1xf32, #tpu.memory_space<vmem>>, %arg7: memref<32x1xf32, #tpu.memory_space<vmem>>, %arg8: memref<32x1xf32, #tpu.memory_space<vmem>>) attributes {dimension_semantics = [#tpu.dimension_semantics<arbitrary>, #tpu.dimension_semantics<arbitrary>], iteration_bounds = array<i64: 2, 1>, scalar_prefetch = 0 : i64, scratch_operands = 0 : i64, tpu.core_type = #tpu.core_type<tc>, window_params = [{transform_indices = @transform_0, window_bounds = array<i64: 1, 4, 16>}, {pipeline_mode = #tpu.pipeline_mode<synchronous>, transform_indices = @transform_1, window_bounds = array<i64: 32, 4>}, {transform_indices = @transform_2, window_bounds = array<i64: 1, 32, 1>}, {pipeline_mode = #tpu.pipeline_mode<synchronous>, transform_indices = @transform_3, window_bounds = array<i64: 32, 1>}, {pipeline_mode = #tpu.pipeline_mode<synchronous>, transform_indices = @transform_4, window_bounds = array<i64: 32, 1>}, {pipeline_mode = #tpu.pipeline_mode<synchronous>, transform_indices = @transform_5, window_bounds = array<i64: 32, 1>}, {pipeline_mode = #tpu.pipeline_mode<synchronous>, transform_indices = @transform_6, window_bounds = array<i64: 32, 1>}]} {
    %c0_i32 = arith.constant 0 : i32
    %0 = arith.cmpi eq, %arg0, %c0_i32 : i32
    %c0_i32_0 = arith.constant 0 : i32
    %1 = arith.cmpi eq, %arg1, %c0_i32_0 : i32
    %2 = arith.andi %0, %1 : i1
    %3 = arith.extui %2 : i1 to i32
    %c0_i32_1 = arith.constant 0 : i32
    %4 = arith.cmpi ne, %3, %c0_i32_1 : i32
    scf.if %4 {
      %cst_21 = arith.constant 0.000000e+00 : f32
      %29 = vector.broadcast %cst_21 : f32 to vector<32x1xf32>
      %c0_22 = arith.constant 0 : index
      %c0_23 = arith.constant 0 : index
      %30 = vector.load %arg7[%c0_22, %c0_23] : memref<32x1xf32, #tpu.memory_space<vmem>>, vector<32x1xf32>
      tpu.vector_store %arg7[%c0_22, %c0_23], %29 {strides = array<i32>} : memref<32x1xf32, #tpu.memory_space<vmem>>, vector<32x1xf32>,
      %cst_24 = arith.constant 0.000000e+00 : f32
      %31 = vector.broadcast %cst_24 : f32 to vector<32x1xf32>
      %c0_25 = arith.constant 0 : index
      %c0_26 = arith.constant 0 : index
      %32 = vector.load %arg8[%c0_25, %c0_26] : memref<32x1xf32, #tpu.memory_space<vmem>>, vector<32x1xf32>
      tpu.vector_store %arg8[%c0_25, %c0_26], %31 {strides = array<i32>} : memref<32x1xf32, #tpu.memory_space<vmem>>, vector<32x1xf32>,
    } else {
    }
    %c0 = arith.constant 0 : index
    %c0_2 = arith.constant 0 : index
    %5 = vector.load %arg3[%c0, %c0_2] : memref<32x4xf32, #tpu.memory_space<vmem>>, vector<32x4xf32>
    %c0_3 = arith.constant 0 : index
    %c0_4 = arith.constant 0 : index
    %c0_5 = arith.constant 0 : index
    %6 = vector.load %arg2[%c0_3, %c0_4, %c0_5] : memref<1x4x16xf32, #tpu.memory_space<vmem>>, vector<1x4x16xf32>
    %7 = vector.shape_cast %6 : vector<1x4x16xf32> to vector<4x16xf32>
    %cst = arith.constant dense<0.000000e+00> : vector<32x16xf32>
    %8 = tpu.matmul %5, %7, %cst {dimension_numbers = #tpu.dot_dimension_numbers<[1], [0], [0], [1], [0, 0, 1, 1], [], []>} : vector<32x4xf32>, vector<4x16xf32>, vector<32x16xf32> -> vector<32x16xf32>
    %c0_6 = arith.constant 0 : index
    %c0_7 = arith.constant 0 : index
    %c0_8 = arith.constant 0 : index
    %9 = vector.load %arg4[%c0_6, %c0_7, %c0_8] : memref<1x32x1xf32, #tpu.memory_space<vmem>>, vector<1x32x1xf32>
    %10 = vector.shape_cast %9 : vector<1x32x1xf32> to vector<32x1xf32>
    %11 = vector.broadcast %10 : vector<32x1xf32> to vector<32x16xf32>
    %12 = arith.addf %8, %11 : vector<32x16xf32>
    %c0_9 = arith.constant 0 : index
    %c0_10 = arith.constant 0 : index
    %13 = vector.load %arg7[%c0_9, %c0_10] : memref<32x1xf32, #tpu.memory_space<vmem>>, vector<32x1xf32>
    %cst_11 = arith.constant dense<0.000000e+00> : vector<32xf32>
    %14 = vector.multi_reduction <add>, %12, %cst_11 [1] : vector<32x16xf32> to vector<32xf32>
    %15 = vector.shape_cast %14 : vector<32xf32> to vector<32x1xf32>
    %16 = arith.addf %13, %15 : vector<32x1xf32>
    %c0_12 = arith.constant 0 : index
    %c0_13 = arith.constant 0 : index
    %17 = vector.load %arg7[%c0_12, %c0_13] : memref<32x1xf32, #tpu.memory_space<vmem>>, vector<32x1xf32>
    tpu.vector_store %arg7[%c0_12, %c0_13], %16 {strides = array<i32>} : memref<32x1xf32, #tpu.memory_space<vmem>>, vector<32x1xf32>,
    %c0_14 = arith.constant 0 : index
    %c0_15 = arith.constant 0 : index
    %18 = vector.load %arg8[%c0_14, %c0_15] : memref<32x1xf32, #tpu.memory_space<vmem>>, vector<32x1xf32>
    %19 = arith.mulf %12, %12 : vector<32x16xf32>
    %cst_16 = arith.constant dense<0.000000e+00> : vector<32xf32>
    %20 = vector.multi_reduction <add>, %19, %cst_16 [1] : vector<32x16xf32> to vector<32xf32>
    %21 = vector.shape_cast %20 : vector<32xf32> to vector<32x1xf32>
    %22 = arith.addf %18, %21 : vector<32x1xf32>
    %c0_17 = arith.constant 0 : index
    %c0_18 = arith.constant 0 : index
    %23 = vector.load %arg8[%c0_17, %c0_18] : memref<32x1xf32, #tpu.memory_space<vmem>>, vector<32x1xf32>
    tpu.vector_store %arg8[%c0_17, %c0_18], %22 {strides = array<i32>} : memref<32x1xf32, #tpu.memory_space<vmem>>, vector<32x1xf32>,
    %c1_i32 = arith.constant 1 : i32
    %24 = arith.cmpi eq, %arg0, %c1_i32 : i32
    %c0_i32_19 = arith.constant 0 : i32
    %25 = arith.cmpi eq, %arg1, %c0_i32_19 : i32
    %26 = arith.andi %24, %25 : i1
    %27 = arith.extui %26 : i1 to i32
    %c0_i32_20 = arith.constant 0 : i32
    %28 = arith.cmpi ne, %27, %c0_i32_20 : i32
    scf.if %28 {
      %c0_21 = arith.constant 0 : index
      %c0_22 = arith.constant 0 : index
      %29 = vector.load %arg7[%c0_21, %c0_22] : memref<32x1xf32, #tpu.memory_space<vmem>>, vector<32x1xf32>
      %cst_23 = arith.constant 3.125000e-02 : f32
      %30 = vector.broadcast %cst_23 : f32 to vector<32x1xf32>
      %31 = arith.mulf %29, %30 : vector<32x1xf32>
      %c0_24 = arith.constant 0 : index
      %c0_25 = arith.constant 0 : index
      %32 = vector.load %arg8[%c0_24, %c0_25] : memref<32x1xf32, #tpu.memory_space<vmem>>, vector<32x1xf32>
      %cst_26 = arith.constant 3.125000e-02 : f32
      %33 = vector.broadcast %cst_26 : f32 to vector<32x1xf32>
      %34 = arith.mulf %32, %33 : vector<32x1xf32>
      %35 = arith.mulf %31, %31 : vector<32x1xf32>
      %36 = arith.subf %34, %35 : vector<32x1xf32>
      %c0_27 = arith.constant 0 : index
      %c0_28 = arith.constant 0 : index
      %37 = vector.load %arg5[%c0_27, %c0_28] : memref<32x1xf32, #tpu.memory_space<vmem>>, vector<32x1xf32>
      %cst_29 = arith.constant 9.99999974E-6 : f32
      %38 = vector.broadcast %cst_29 : f32 to vector<32x1xf32>
      %39 = arith.addf %36, %38 : vector<32x1xf32>
      %40 = math.rsqrt %39 : vector<32x1xf32>
      %41 = arith.mulf %37, %40 : vector<32x1xf32>
      %c0_30 = arith.constant 0 : index
      %c0_31 = arith.constant 0 : index
      %42 = vector.load %arg7[%c0_30, %c0_31] : memref<32x1xf32, #tpu.memory_space<vmem>>, vector<32x1xf32>
      tpu.vector_store %arg7[%c0_30, %c0_31], %41 {strides = array<i32>} : memref<32x1xf32, #tpu.memory_space<vmem>>, vector<32x1xf32>,
      %c0_32 = arith.constant 0 : index
      %c0_33 = arith.constant 0 : index
      %43 = vector.load %arg6[%c0_32, %c0_33] : memref<32x1xf32, #tpu.memory_space<vmem>>, vector<32x1xf32>
      %44 = arith.mulf %31, %41 : vector<32x1xf32>
      %45 = arith.subf %43, %44 : vector<32x1xf32>
      %c0_34 = arith.constant 0 : index
      %c0_35 = arith.constant 0 : index
      %46 = vector.load %arg8[%c0_34, %c0_35] : memref<32x1xf32, #tpu.memory_space<vmem>>, vector<32x1xf32>
      tpu.vector_store %arg8[%c0_34, %c0_35], %45 {strides = array<i32>} : memref<32x1xf32, #tpu.memory_space<vmem>>, vector<32x1xf32>,
    } else {
    }
    return
  }
  func.func @transform_0(%arg0: i32, %arg1: i32) -> (i32, i32, i32) {
    %c0_i32 = arith.constant 0 : i32
    %c0_i32_0 = arith.constant 0 : i32
    return %arg0, %c0_i32, %arg1 : i32, i32, i32
  }
  func.func @transform_1(%arg0: i32, %arg1: i32) -> (i32, i32) {
    %c0_i32 = arith.constant 0 : i32
    %c0_i32_0 = arith.constant 0 : i32
    %c0_i32_1 = arith.constant 0 : i32
    return %c0_i32, %c0_i32_0 : i32, i32
  }
  func.func @transform_2(%arg0: i32, %arg1: i32) -> (i32, i32, i32) {
    %c0_i32 = arith.constant 0 : i32
    %c0_i32_0 = arith.constant 0 : i32
    %c0_i32_1 = arith.constant 0 : i32
    return %arg0, %c0_i32, %c0_i32_0 : i32, i32, i32
  }
  func.func @transform_3(%arg0: i32, %arg1: i32) -> (i32, i32) {
    %c0_i32 = arith.constant 0 : i32
    %c0_i32_0 = arith.constant 0 : i32
    %c0_i32_1 = arith.constant 0 : i32
    return %c0_i32, %c0_i32_0 : i32, i32
  }
  func.func @transform_4(%arg0: i32, %arg1: i32) -> (i32, i32) {
    %c0_i32 = arith.constant 0 : i32
    %c0_i32_0 = arith.constant 0 : i32
    %c0_i32_1 = arith.constant 0 : i32
    return %c0_i32, %c0_i32_0 : i32, i32
  }
  func.func @transform_5(%arg0: i32, %arg1: i32) -> (i32, i32) {
    %c0_i32 = arith.constant 0 : i32
    %c0_i32_0 = arith.constant 0 : i32
    %c0_i32_1 = arith.constant 0 : i32
    return %c0_i32, %c0_i32_0 : i32, i32
  }
  func.func @transform_6(%arg0: i32, %arg1: i32) -> (i32, i32) {
    %c0_i32 = arith.constant 0 : i32
    %c0_i32_0 = arith.constant 0 : i32
    %c0_i32_1 = arith.constant 0 : i32
    return %c0_i32, %c0_i32_0 : i32, i32
  }
}

</mosaic_0001>

<llo_original>
// kernel: tpu_custom_call.1
$region0: #{tpu_custom_call.1}
  #allocation0 [shape = 'u32[]', space=smem, size = 0x4, offset = 0x4, fixed_abs, tag = 'smem constant byte address 0x4 - core index']
  #allocation1 [shape = 'u32[72,128]{1,0:T(1,128)}', space=vmem, size = 0x9000, scoped, tag = 'internal scratch']
  %s0 = inlined_call_operand.vmem [shape: f32[2,4,16], index: 0, kind: input, shape index: {}]
  %s1 = inlined_call_operand.vmem [shape: f32[32,4], index: 1, kind: input, shape index: {}]
  %s2 = inlined_call_operand.vmem [shape: f32[2,32,1], index: 2, kind: input, shape index: {}]
  %s3 = inlined_call_operand.vmem [shape: f32[32,1], index: 3, kind: input, shape index: {}]
  %s4 = inlined_call_operand.vmem [shape: f32[32,1], index: 4, kind: input, shape index: {}]
  %s5 = inlined_call_operand.vmem [shape: f32[32,1], index: 5, kind: output, shape index: {0}]
  %s6 = inlined_call_operand.vmem [shape: f32[32,1], index: 6, kind: output, shape index: {1}]
  %7 = xla_tuple %s5, %s6
  %s8 = sld [smem:[#allocation0]]
  $region69: #{tpu_custom_call.1} parent=0
    _
  %s10 = ssub.s32 1, %s8
  %s11 = scalar_select 0, %s10, %s8
  loop: start=0, step=1, limit=4
  $region2: #{tpu_custom_call.1} parent=0 // loop_pre_header
    _
  $region3: #{tpu_custom_call.1} parent=0 // loop_header
    %s13 = sphi 0, %s17
    %p14 = scmp.ge.s32.totalorder %s13, 4
    %s20 = sphi 0, %s32
    %s21 = sphi 0, %s28
    %s22 = sphi 0, %s20
    %s23 = sphi 0, %s21
    %s24 = sphi 0, %s22
    %s25 = sphi 0, %s23
    %s37 = sphi 0, %s39
    %s40 = sphi 0, %s37
    %s41 = sphi 0, %s40
    %s57 = sphi 0, %s41
    %s61 = sphi 0, %s61
    %s63 = sphi 0, %s61
    %s64 = sphi 0, %s63
    %s78 = sphi 0, %s64
    %s84 = sphi 0, %s86
    %s87 = sphi 0, %s84
    %s88 = sphi 0, %s87
    %s104 = sphi 0, %s88
    %s108 = sphi 0, %s108
    %s110 = sphi 0, %s108
    %s111 = sphi 0, %s110
    %s125 = sphi 0, %s111
    %s129 = sphi 0, %s129
    %s131 = sphi 0, %s129
    %s132 = sphi 0, %s131
    %s146 = sphi 0, %s132
    %s150 = sphi 0, %s150
    %s152 = sphi 0, %s150
    %s153 = sphi 0, %s152
    %s167 = sphi 0, %s153
    %s171 = sphi 0, %s171
    %s173 = sphi 0, %s171
    %s174 = sphi 0, %s173
    %s188 = sphi 0, %s174
  $region4: #{tpu_custom_call.1} parent=0 // loop_header_branch
    %16 = sbr.rel (%p14) target = $region8
  $region5: #{tpu_custom_call.1} parent=0 // loop_body
    %s18 = ssub.s32 %s13, 1
    %s19 = ssub.s32 %s13, 2
    %s26 = sadd.s32 1, %s21
    %p27 = scmp.ge.s32.totalorder %s26, 1
    %s28 = scalar_select %p27, 0, %s26
    %s29 = sadd.s32 1, %s20
    %s30 = scalar_select %p27, %s29, %s20
    %p31 = scmp.ge.s32.totalorder %s30, 2
    %s32 = scalar_select %p31, 0, %s30
    %s33 = ssub.s32 %s20, %s32
    %s34 = ssub.s32 %s21, %s28
    %s35 = sor.u32 %s33, %s34
    %p36 = scmp.eq.s32.totalorder %s35, 0
    %s38 = sadd.s32 %s37, 1
    %s39 = scalar_select %p36, %s37, %s38
    %p42 = pneg %p36
    %p43 = scmp.eq.s32.totalorder %s13, 1
    %p44 = por %p42, %p43
    %p45 = scmp.ne.s32.totalorder %s37, %s40
    %p46 = scmp.eq.s32.totalorder %s13, 0
    %p47 = por %p45, %p46
    %p48 = scmp.ne.s32.totalorder %s37, %s40
    %p49 = scmp.eq.s32.totalorder %s18, 1
    %p50 = por %p48, %p49
    %p51 = scmp.ne.s32.totalorder %s40, %s41
    %p52 = scmp.eq.s32.totalorder %s18, 0
    %p53 = por %p51, %p52
    %p54 = scmp.ne.s32.totalorder %s40, %s41
    %p55 = scmp.eq.s32.totalorder %s19, 1
    %p56 = por %p54, %p55
    %p58 = scmp.ne.s32.totalorder %s41, %s57
    %p59 = scmp.eq.s32.totalorder %s19, 0
    %p60 = por %p58, %p59
    %s62 = sadd.s32 %s61, 1
    %p65 = scmp.eq.s32.totalorder %s13, 1
    %p66 = scmp.ne.s32.totalorder %s61, %s63
    %p67 = scmp.eq.s32.totalorder %s13, 0
    %p68 = por %p66, %p67
    %p69 = scmp.ne.s32.totalorder %s61, %s63
    %p70 = scmp.eq.s32.totalorder %s18, 1
    %p71 = por %p69, %p70
    %p72 = scmp.ne.s32.totalorder %s63, %s64
    %p73 = scmp.eq.s32.totalorder %s18, 0
    %p74 = por %p72, %p73
    %p75 = scmp.ne.s32.totalorder %s63, %s64
    %p76 = scmp.eq.s32.totalorder %s19, 1
    %p77 = por %p75, %p76
    %p79 = scmp.ne.s32.totalorder %s64, %s78
    %p80 = scmp.eq.s32.totalorder %s19, 0
    %p81 = por %p79, %p80
    %s82 = ssub.s32 %s20, %s32
    %p83 = scmp.eq.s32.totalorder %s82, 0
    %s85 = sadd.s32 %s84, 1
    %s86 = scalar_select %p83, %s84, %s85
    %p89 = pneg %p83
    %p90 = scmp.eq.s32.totalorder %s13, 1
    %p91 = por %p89, %p90
    %p92 = scmp.ne.s32.totalorder %s84, %s87
    %p93 = scmp.eq.s32.totalorder %s13, 0
    %p94 = por %p92, %p93
    %p95 = scmp.ne.s32.totalorder %s84, %s87
    %p96 = scmp.eq.s32.totalorder %s18, 1
    %p97 = por %p95, %p96
    %p98 = scmp.ne.s32.totalorder %s87, %s88
    %p99 = scmp.eq.s32.totalorder %s18, 0
    %p100 = por %p98, %p99
    %p101 = scmp.ne.s32.totalorder %s87, %s88
    %p102 = scmp.eq.s32.totalorder %s19, 1
    %p103 = por %p101, %p102
    %p105 = scmp.ne.s32.totalorder %s88, %s104
    %p106 = scmp.eq.s32.totalorder %s19, 0
    %p107 = por %p105, %p106
    %s109 = sadd.s32 %s108, 1
    %p112 = scmp.eq.s32.totalorder %s13, 1
    %p113 = scmp.ne.s32.totalorder %s108, %s110
    %p114 = scmp.eq.s32.totalorder %s13, 0
    %p115 = por %p113, %p114
    %p116 = scmp.ne.s32.totalorder %s108, %s110
    %p117 = scmp.eq.s32.totalorder %s18, 1
    %p118 = por %p116, %p117
    %p119 = scmp.ne.s32.totalorder %s110, %s111
    %p120 = scmp.eq.s32.totalorder %s18, 0
    %p121 = por %p119, %p120
    %p122 = scmp.ne.s32.totalorder %s110, %s111
    %p123 = scmp.eq.s32.totalorder %s19, 1
    %p124 = por %p122, %p123
    %p126 = scmp.ne.s32.totalorder %s111, %s125
    %p127 = scmp.eq.s32.totalorder %s19, 0
    %p128 = por %p126, %p127
    %s130 = sadd.s32 %s129, 1
    %p133 = scmp.eq.s32.totalorder %s13, 1
    %p134 = scmp.ne.s32.totalorder %s129, %s131
    %p135 = scmp.eq.s32.totalorder %s13, 0
    %p136 = por %p134, %p135
    %p137 = scmp.ne.s32.totalorder %s129, %s131
    %p138 = scmp.eq.s32.totalorder %s18, 1
    %p139 = por %p137, %p138
    %p140 = scmp.ne.s32.totalorder %s131, %s132
    %p141 = scmp.eq.s32.totalorder %s18, 0
    %p142 = por %p140, %p141
    %p143 = scmp.ne.s32.totalorder %s131, %s132
    %p144 = scmp.eq.s32.totalorder %s19, 1
    %p145 = por %p143, %p144
    %p147 = scmp.ne.s32.totalorder %s132, %s146
    %p148 = scmp.eq.s32.totalorder %s19, 0
    %p149 = por %p147, %p148
    %s151 = sadd.s32 %s150, 1
    %p154 = scmp.eq.s32.totalorder %s13, 1
    %p155 = scmp.ne.s32.totalorder %s150, %s152
    %p156 = scmp.eq.s32.totalorder %s13, 0
    %p157 = por %p155, %p156
    %p158 = scmp.ne.s32.totalorder %s150, %s152
    %p159 = scmp.eq.s32.totalorder %s18, 1
    %p160 = por %p158, %p159
    %p161 = scmp.ne.s32.totalorder %s152, %s153
    %p162 = scmp.eq.s32.totalorder %s18, 0
    %p163 = por %p161, %p162
    %p164 = scmp.ne.s32.totalorder %s152, %s153
    %p165 = scmp.eq.s32.totalorder %s19, 1
    %p166 = por %p164, %p165
    %p168 = scmp.ne.s32.totalorder %s153, %s167
    %p169 = scmp.eq.s32.totalorder %s19, 0
    %p170 = por %p168, %p169
    %s172 = sadd.s32 %s171, 1
    %p175 = scmp.eq.s32.totalorder %s13, 1
    %p176 = scmp.ne.s32.totalorder %s171, %s173
    %p177 = scmp.eq.s32.totalorder %s13, 0
    %p178 = por %p176, %p177
    %p179 = scmp.ne.s32.totalorder %s171, %s173
    %p180 = scmp.eq.s32.totalorder %s18, 1
    %p181 = por %p179, %p180
    %p182 = scmp.ne.s32.totalorder %s173, %s174
    %p183 = scmp.eq.s32.totalorder %s18, 0
    %p184 = por %p182, %p183
    %p185 = scmp.ne.s32.totalorder %s173, %s174
    %p186 = scmp.eq.s32.totalorder %s19, 1
    %p187 = por %p185, %p186
    %p189 = scmp.ne.s32.totalorder %s174, %s188
    %p190 = scmp.eq.s32.totalorder %s19, 0
    %p191 = por %p189, %p190
    %p192 = scmp.le.s32.totalorder 1, %s13
    %p193 = scmp.lt.s32.totalorder %s13, 3
    %p194 = pnand %p192, %p193
    %p195 = pneg %p194
    // Predicated region
    $region9: #{tpu_custom_call.1} parent=5 // pred_check
      _
    $region10: #{tpu_custom_call.1} parent=5 // pred_check_branch
      %197 = sbr.rel (%p194) target = $region12
    $region11: #{tpu_custom_call.1} parent=5 // pred_region
      %s198 = ssub.s32 %s13, 1
      // Predicated region
      $region13: #{tpu_custom_call.1} parent=11 // pred_check
        %p199 = pneg %p74
      $region14: #{tpu_custom_call.1} parent=11 // pred_check_branch
        %201 = sbr.rel (%p199) target = $region16
      $region15: #{tpu_custom_call.1} parent=11 // pred_region
        _
      $region16: #{tpu_custom_call.1} parent=11 // pred_fallthru
        _
      // Predicated region
      $region17: #{tpu_custom_call.1} parent=11 // pred_check
        %p202 = pneg %p121
      $region18: #{tpu_custom_call.1} parent=11 // pred_check_branch
        %204 = sbr.rel (%p202) target = $region20
      $region19: #{tpu_custom_call.1} parent=11 // pred_region
        _
      $region20: #{tpu_custom_call.1} parent=11 // pred_fallthru
        _
      // Predicated region
      $region21: #{tpu_custom_call.1} parent=11 // pred_check
        %p205 = pneg %p142
      $region22: #{tpu_custom_call.1} parent=11 // pred_check_branch
        %207 = sbr.rel (%p205) target = $region24
      $region23: #{tpu_custom_call.1} parent=11 // pred_region
        _
      $region24: #{tpu_custom_call.1} parent=11 // pred_fallthru
        _
    $region12: #{tpu_custom_call.1} parent=5 // pred_fallthru
      _
    %p208 = scmp.lt.s32.totalorder %s13, 2
    // Predicated region
    $region25: #{tpu_custom_call.1} parent=5 // pred_check
      %p209 = pneg %p208
    $region26: #{tpu_custom_call.1} parent=5 // pred_check_branch
      %211 = sbr.rel (%p209) target = $region28
    $region27: #{tpu_custom_call.1} parent=5 // pred_region
      // Predicated region
      $region29: #{tpu_custom_call.1} parent=27 // pred_check
        %p212 = pneg %p47
      $region30: #{tpu_custom_call.1} parent=27 // pred_check_branch
        %214 = sbr.rel (%p212) target = $region32
      $region31: #{tpu_custom_call.1} parent=27 // pred_region
        %p215 = scmp.lt.s32.totalorder %s20, 1
        %s216 = scalar_select %p215, %s20, 1
        %p217 = scmp.lt.s32.totalorder %s21, 0
        %s218 = scalar_select %p217, %s21, 0
        %s219 = sadd.s32 %s218, %s216
        %s220 = smul.addr %s219, 4
        %s221 = scalar_lea.vmem %s0, %s220
      $region32: #{tpu_custom_call.1} parent=27 // pred_fallthru
        _
      // Predicated region
      $region33: #{tpu_custom_call.1} parent=27 // pred_check
        %p222 = pneg %p94
      $region34: #{tpu_custom_call.1} parent=27 // pred_check_branch
        %224 = sbr.rel (%p222) target = $region36
      $region35: #{tpu_custom_call.1} parent=27 // pred_region
        %p225 = scmp.lt.s32.totalorder %s20, 1
        %s226 = scalar_select %p225, %s20, 1
        %s227 = smul.addr %s226, 4
        %s228 = smul.addr %s227, 8
        %s229 = scalar_lea.vmem %s2, %s228
      $region36: #{tpu_custom_call.1} parent=27 // pred_fallthru
        _
    $region28: #{tpu_custom_call.1} parent=5 // pred_fallthru
      _
    %p230 = scmp.le.s32.totalorder 1, %s13
    %p231 = scmp.lt.s32.totalorder %s13, 3
    %p232 = pnand %p230, %p231
    %p233 = pneg %p232
    // Predicated region
    $region37: #{tpu_custom_call.1} parent=5 // pred_check
      _
    $region38: #{tpu_custom_call.1} parent=5 // pred_check_branch
      %235 = sbr.rel (%p232) target = $region40
    $region39: #{tpu_custom_call.1} parent=5 // pred_region
      %s236 = ssub.s32 %s13, 1
      %p237 = scmp.lt.s32.totalorder %s22, 1
      %s238 = scalar_select %p237, %s22, 1
      %p239 = scmp.lt.s32.totalorder %s23, 0
      %s240 = scalar_select %p239, %s23, 0
      %s241 = sadd.s32 %s240, %s238
      %s242 = smul.addr %s241, 4
      %s243 = scalar_lea.vmem %s0, %s242
      %p244 = pneg %p53
      %p245 = pneg %p50
      %p246 = pneg %p74
      %p247 = pneg %p71
      %p248 = scmp.lt.s32.totalorder %s22, 1
      %s249 = scalar_select %p248, %s22, 1
      %s250 = smul.addr %s249, 4
      %s251 = smul.addr %s250, 8
      %s252 = scalar_lea.vmem %s2, %s251
      %p253 = pneg %p100
      %p254 = pneg %p97
      %p255 = pneg %p121
      %p256 = pneg %p118
      %p257 = pneg %p142
      %p258 = pneg %p139
      %p259 = pneg %p163
      %p260 = pneg %p160
      %p261 = pneg %p184
      %p262 = pneg %p181
      %p263 = scmp.lt.s32.totalorder %s22, 1
      %s264 = scalar_select %p263, %s22, 1
      %p265 = scmp.lt.s32.totalorder %s23, 0
      %s266 = scalar_select %p265, %s23, 0
      %s267 = sadd.s32 %s266, %s264
      %s268 = smul.addr %s267, 4
      %s269 = scalar_lea.vmem %s0, %s268
      %p270 = scmp.lt.s32.totalorder %s22, 1
      %s271 = scalar_select %p270, %s22, 1
      %s272 = smul.addr %s271, 4
      %s273 = smul.addr %s272, 8
      %s274 = scalar_lea.vmem %s2, %s273
      %p275 = scmp.eq.s32.totalorder %s22, 0
      %p276 = scmp.eq.s32.totalorder %s23, 0
      %p277 = pnand %p275, %p276
      %p278 = pneg %p277
      // Predicated region
      $region41: #{tpu_custom_call.1} parent=39 // pred_check
        _
      $region42: #{tpu_custom_call.1} parent=39 // pred_check_branch
        %280 = sbr.rel (%p277) target = $region44
      $region43: #{tpu_custom_call.1} parent=39 // pred_region
        %vm281 = vcmask 7168
        %282 = vst.msk [vmem:[%s5] sm:$0xff] %vm281, 0.0
        %283 = vst.msk [vmem:[%s5 + $0x8] sm:$0xff] %vm281, 0.0
        %284 = vst.msk [vmem:[%s5 + $0x10] sm:$0xff] %vm281, 0.0
        %285 = vst.msk [vmem:[%s5 + $0x18] sm:$0xff] %vm281, 0.0
        %286 = vst.msk [vmem:[%s6] sm:$0xff] %vm281, 0.0
        %287 = vst.msk [vmem:[%s6 + $0x8] sm:$0xff] %vm281, 0.0
        %288 = vst.msk [vmem:[%s6 + $0x10] sm:$0xff] %vm281, 0.0
        %289 = vst.msk [vmem:[%s6 + $0x18] sm:$0xff] %vm281, 0.0
      $region44: #{tpu_custom_call.1} parent=39 // pred_fallthru
        _
      %v290 = vld [vmem:[%s1] sm:$0xff]
      %v291 = vld [vmem:[%s1 + $0x8] sm:$0xff]
      %v292 = vld [vmem:[%s1 + $0x10] sm:$0xff]
      %v293 = vld [vmem:[%s1 + $0x18] sm:$0xff]
      %v294 = vld [vmem:[%s269] sm:$0xf]
      %v295 = vld [vmem:[%s274] sm:$0xff]
      %v296 = vld [vmem:[%s274 + $0x8] sm:$0xff]
      %v297 = vld [vmem:[%s274 + $0x10] sm:$0xff]
      %v298 = vld [vmem:[%s274 + $0x18] sm:$0xff]
      %300 = vset.pattern.permute.xlu0 0
      %301 = vperm.xlu0 %300, %v295
      %v302 = vpop.permute.xlu0 %301
      %305 = vset.pattern.permute.xlu0 0
      %306 = vperm.xlu0 %305, %v296
      %v307 = vpop.permute.xlu0 %306
      %310 = vset.pattern.permute.xlu0 0
      %311 = vperm.xlu0 %310, %v297
      %v312 = vpop.permute.xlu0 %311
      %315 = vset.pattern.permute.xlu0 0
      %316 = vperm.xlu0 %315, %v298
      %v317 = vpop.permute.xlu0 %316
      %vm319 = vcmask 31744
      %v321 = vsel %vm319, %v290, 0
      %v324 = vsel %vm319, %v291, 0
      %v327 = vsel %vm319, %v292, 0
      %v330 = vsel %vm319, %v293, 0
      %vm332 = vcmask 1043456
      %v334 = vsel %vm332, %v294, 0
      %336 = vmatpush.msra.mxu0 0.0
      %337 = vmatpush.msra.mxu0 0.0
      %338 = vmatpush.msra.mxu0 0.0
      %339 = vmatpush.msra.mxu0 0.0
      %340 = vmatpush.msra.mxu0 0.0
      %341 = vmatpush.msra.mxu0 0.0
      %342 = vmatpush.msra.mxu0 0.0
      %343 = vmatpush.msra.mxu0 0.0
      %344 = vmatpush.msra.mxu0 0.0
      %345 = vmatpush.msra.mxu0 0.0
      %346 = vmatpush.msra.mxu0 0.0
      %347 = vmatpush.msra.mxu0 0.0
      %348 = vmatpush.msra.mxu0 0.0
      %349 = vmatpush.msra.mxu0 0.0
      %350 = vmatpush.msra.mxu0 0.0
      %351 = vmatpush.msra.mxu0 %v334
      %352 = vmatmul.f32.gmra.mxu0 %v321
      %v353 = vpop.f32.mrf.mxu0
      %v354 = vadd.f32 %v302, %v353
      %355 = vmatmul.f32.gmra.mxu0 %v324
      %v356 = vpop.f32.mrf.mxu0
      %v357 = vadd.f32 %v307, %v356
      %358 = vmatmul.f32.gmra.mxu0 %v327
      %v359 = vpop.f32.mrf.mxu0
      %v360 = vadd.f32 %v312, %v359
      %361 = vmatmul.f32.gmra.mxu0 %v330
      %v362 = vpop.f32.mrf.mxu0
      %v363 = vadd.f32 %v317, %v362
      %364 = vdwg.mxu0
      %v365 = vld [vmem:[%s5] sm:$0xff]
      %v366 = vld [vmem:[%s5 + $0x8] sm:$0xff]
      %v367 = vld [vmem:[%s5 + $0x10] sm:$0xff]
      %v368 = vld [vmem:[%s5 + $0x18] sm:$0xff]
      %vm369 = vcmask 130048
      %v370 = vsel %vm369, %v354, 0.0
      %371 = vadd.xlane.f32.xlu0 %v370
      %v372 = vpop.xlane.xlu0 %371
      %v373 = vsel %vm369, %v357, 0.0
      %374 = vadd.xlane.f32.xlu0 %v373
      %v375 = vpop.xlane.xlu0 %374
      %v376 = vsel %vm369, %v360, 0.0
      %377 = vadd.xlane.f32.xlu0 %v376
      %v378 = vpop.xlane.xlu0 %377
      %v379 = vsel %vm369, %v363, 0.0
      %380 = vadd.xlane.f32.xlu0 %v379
      %v381 = vpop.xlane.xlu0 %380
      %v382 = vadd.f32 %v365, %v372
      %v383 = vadd.f32 %v366, %v375
      %v384 = vadd.f32 %v367, %v378
      %v385 = vadd.f32 %v368, %v381
      %vm386 = vcmask 7168
      %387 = vst.msk [vmem:[%s5] sm:$0xff] %vm386, %v382
      %388 = vst.msk [vmem:[%s5 + $0x8] sm:$0xff] %vm386, %v383
      %389 = vst.msk [vmem:[%s5 + $0x10] sm:$0xff] %vm386, %v384
      %390 = vst.msk [vmem:[%s5 + $0x18] sm:$0xff] %vm386, %v385
      %v391 = vld [vmem:[%s6] sm:$0xff]
      %v392 = vld [vmem:[%s6 + $0x8] sm:$0xff]
      %v393 = vld [vmem:[%s6 + $0x10] sm:$0xff]
      %v394 = vld [vmem:[%s6 + $0x18] sm:$0xff]
      %v395 = vmul.f32 %v354, %v354
      %v396 = vmul.f32 %v357, %v357
      %v397 = vmul.f32 %v360, %v360
      %v398 = vmul.f32 %v363, %v363
      %v399 = vsel %vm369, %v395, 0.0
      %400 = vadd.xlane.f32.xlu0 %v399
      %v401 = vpop.xlane.xlu0 %400
      %v402 = vsel %vm369, %v396, 0.0
      %403 = vadd.xlane.f32.xlu0 %v402
      %v404 = vpop.xlane.xlu0 %403
      %v405 = vsel %vm369, %v397, 0.0
      %406 = vadd.xlane.f32.xlu0 %v405
      %v407 = vpop.xlane.xlu0 %406
      %v408 = vsel %vm369, %v398, 0.0
      %409 = vadd.xlane.f32.xlu0 %v408
      %v410 = vpop.xlane.xlu0 %409
      %v411 = vadd.f32 %v391, %v401
      %v412 = vadd.f32 %v392, %v404
      %v413 = vadd.f32 %v393, %v407
      %v414 = vadd.f32 %v394, %v410
      %415 = vst.msk [vmem:[%s6] sm:$0xff] %vm386, %v411
      %416 = vst.msk [vmem:[%s6 + $0x8] sm:$0xff] %vm386, %v412
      %417 = vst.msk [vmem:[%s6 + $0x10] sm:$0xff] %vm386, %v413
      %418 = vst.msk [vmem:[%s6 + $0x18] sm:$0xff] %vm386, %v414
      %p419 = scmp.eq.s32.totalorder %s22, 1
      %p420 = pnand %p419, %p276
      %p421 = pneg %p420
      // Predicated region
      $region45: #{tpu_custom_call.1} parent=39 // pred_check
        _
      $region46: #{tpu_custom_call.1} parent=39 // pred_check_branch
        %423 = sbr.rel (%p420) target = $region48
      $region47: #{tpu_custom_call.1} parent=39 // pred_region
        %v424 = vld [vmem:[%s5] sm:$0xff]
        %v425 = vld [vmem:[%s5 + $0x8] sm:$0xff]
        %v426 = vld [vmem:[%s5 + $0x10] sm:$0xff]
        %v427 = vld [vmem:[%s5 + $0x18] sm:$0xff]
        %v428 = vmul.f32 %v424, 0.03125
        %v429 = vmul.f32 %v425, 0.03125
        %v430 = vmul.f32 %v426, 0.03125
        %v431 = vmul.f32 %v427, 0.03125
        %v432 = vld [vmem:[%s6] sm:$0xff]
        %v433 = vld [vmem:[%s6 + $0x8] sm:$0xff]
        %v434 = vld [vmem:[%s6 + $0x10] sm:$0xff]
        %v435 = vld [vmem:[%s6 + $0x18] sm:$0xff]
        %v436 = vmul.f32 %v432, 0.03125
        %v437 = vmul.f32 %v433, 0.03125
        %v438 = vmul.f32 %v434, 0.03125
        %v439 = vmul.f32 %v435, 0.03125
        %v440 = vmul.f32 %v428, %v428
        %v441 = vmul.f32 %v429, %v429
        %v442 = vmul.f32 %v430, %v430
        %v443 = vmul.f32 %v431, %v431
        %v444 = vsub.f32 %v436, %v440
        %v445 = vsub.f32 %v437, %v441
        %v446 = vsub.f32 %v438, %v442
        %v447 = vsub.f32 %v439, %v443
        %v448 = vld [vmem:[%s3] sm:$0xff]
        %v449 = vld [vmem:[%s3 + $0x8] sm:$0xff]
        %v450 = vld [vmem:[%s3 + $0x10] sm:$0xff]
        %v451 = vld [vmem:[%s3 + $0x18] sm:$0xff]
        %v452 = vadd.f32 %v444, 1e-05
        %v453 = vadd.f32 %v445, 1e-05
        %v454 = vadd.f32 %v446, 1e-05
        %v455 = vadd.f32 %v447, 1e-05
        %v456 = vrsqrt.pop %v452
        %v457 = vmul.f32 %v456, %v452
        %v458 = vmul.f32 %v457, %v456
        %v459 = vmul.f32 0.5, %v458
        %v460 = vsub.f32 1.5, %v459
        %v461 = vmul.f32 %v456, %v460
        %vm462 = vweird.f32 %v452
        %vm463 = vweird.f32 %v456
        %vm464 = vmor %vm462, %vm463
        %v465 = vsel %vm464, %v456, %v461
        %v466 = vrsqrt.pop %v453
        %v467 = vmul.f32 %v466, %v453
        %v468 = vmul.f32 %v467, %v466
        %v469 = vmul.f32 0.5, %v468
        %v470 = vsub.f32 1.5, %v469
        %v471 = vmul.f32 %v466, %v470
        %vm472 = vweird.f32 %v453
        %vm473 = vweird.f32 %v466
        %vm474 = vmor %vm472, %vm473
        %v475 = vsel %vm474, %v466, %v471
        %v476 = vrsqrt.pop %v454
        %v477 = vmul.f32 %v476, %v454
        %v478 = vmul.f32 %v477, %v476
        %v479 = vmul.f32 0.5, %v478
        %v480 = vsub.f32 1.5, %v479
        %v481 = vmul.f32 %v476, %v480
        %vm482 = vweird.f32 %v454
        %vm483 = vweird.f32 %v476
        %vm484 = vmor %vm482, %vm483
        %v485 = vsel %vm484, %v476, %v481
        %v486 = vrsqrt.pop %v455
        %v487 = vmul.f32 %v486, %v455
        %v488 = vmul.f32 %v487, %v486
        %v489 = vmul.f32 0.5, %v488
        %v490 = vsub.f32 1.5, %v489
        %v491 = vmul.f32 %v486, %v490
        %vm492 = vweird.f32 %v455
        %vm493 = vweird.f32 %v486
        %vm494 = vmor %vm492, %vm493
        %v495 = vsel %vm494, %v486, %v491
        %v496 = vmul.f32 %v448, %v465
        %v497 = vmul.f32 %v449, %v475
        %v498 = vmul.f32 %v450, %v485
        %v499 = vmul.f32 %v451, %v495
        %500 = vst.msk [vmem:[%s5] sm:$0xff] %vm386, %v496
        %501 = vst.msk [vmem:[%s5 + $0x8] sm:$0xff] %vm386, %v497
        %502 = vst.msk [vmem:[%s5 + $0x10] sm:$0xff] %vm386, %v498
        %503 = vst.msk [vmem:[%s5 + $0x18] sm:$0xff] %vm386, %v499
        %v504 = vld [vmem:[%s4] sm:$0xff]
        %v505 = vld [vmem:[%s4 + $0x8] sm:$0xff]
        %v506 = vld [vmem:[%s4 + $0x10] sm:$0xff]
        %v507 = vld [vmem:[%s4 + $0x18] sm:$0xff]
        %v508 = vmul.f32 %v428, %v496
        %v509 = vmul.f32 %v429, %v497
        %v510 = vmul.f32 %v430, %v498
        %v511 = vmul.f32 %v431, %v499
        %v512 = vsub.f32 %v504, %v508
        %v513 = vsub.f32 %v505, %v509
        %v514 = vsub.f32 %v506, %v510
        %v515 = vsub.f32 %v507, %v511
        %516 = vst.msk [vmem:[%s6] sm:$0xff] %vm386, %v512
        %517 = vst.msk [vmem:[%s6 + $0x8] sm:$0xff] %vm386, %v513
        %518 = vst.msk [vmem:[%s6 + $0x10] sm:$0xff] %vm386, %v514
        %519 = vst.msk [vmem:[%s6 + $0x18] sm:$0xff] %vm386, %v515
      $region48: #{tpu_custom_call.1} parent=39 // pred_fallthru
        _
      // Predicated region
      $region49: #{tpu_custom_call.1} parent=39 // pred_check
        %p520 = pneg %p160
      $region50: #{tpu_custom_call.1} parent=39 // pred_check_branch
        %522 = sbr.rel (%p520) target = $region52
      $region51: #{tpu_custom_call.1} parent=39 // pred_region
        _
      $region52: #{tpu_custom_call.1} parent=39 // pred_fallthru
        _
      // Predicated region
      $region53: #{tpu_custom_call.1} parent=39 // pred_check
        %p523 = pneg %p181
      $region54: #{tpu_custom_call.1} parent=39 // pred_check_branch
        %525 = sbr.rel (%p523) target = $region56
      $region55: #{tpu_custom_call.1} parent=39 // pred_region
        _
      $region56: #{tpu_custom_call.1} parent=39 // pred_fallthru
        _
      // Predicated region
      $region57: #{tpu_custom_call.1} parent=39 // pred_check
        %p526 = pneg %p160
      $region58: #{tpu_custom_call.1} parent=39 // pred_check_branch
        %528 = sbr.rel (%p526) target = $region60
      $region59: #{tpu_custom_call.1} parent=39 // pred_region
        _
      $region60: #{tpu_custom_call.1} parent=39 // pred_fallthru
        _
      // Predicated region
      $region61: #{tpu_custom_call.1} parent=39 // pred_check
        %p529 = pneg %p181
      $region62: #{tpu_custom_call.1} parent=39 // pred_check_branch
        %531 = sbr.rel (%p529) target = $region64
      $region63: #{tpu_custom_call.1} parent=39 // pred_region
        _
      $region64: #{tpu_custom_call.1} parent=39 // pred_fallthru
        _
    $region40: #{tpu_custom_call.1} parent=5 // pred_fallthru
      _
    %p532 = scmp.le.s32.totalorder 2, %s13
    // Predicated region
    $region65: #{tpu_custom_call.1} parent=5 // pred_check
      %p533 = pneg %p532
    $region66: #{tpu_custom_call.1} parent=5 // pred_check_branch
      %535 = sbr.rel (%p533) target = $region68
    $region67: #{tpu_custom_call.1} parent=5 // pred_region
      %s536 = ssub.s32 %s13, 2
    $region68: #{tpu_custom_call.1} parent=5 // pred_fallthru
      _
  $region6: #{tpu_custom_call.1} parent=0 // loop_footer
    %s17 = sadd.s32 1, %s13
  $region7: #{tpu_custom_call.1} parent=0 // loop_footer_branch
    %12 = sbr.rel target = $region3
  $region8: #{tpu_custom_call.1} parent=0 // loop_exit
    _

</llo_original>
